<compile_context>
chip_gen: v7x
topology: tpu7x:2x2x1
jax: 0.10.0
libtpu: 0.0.40
codegen_flags: <defaults>
</compile_context>

<pallas_src>
import functools
import math

import jax
import jax.numpy as jnp
from jax.experimental import pallas as pl
from jax.experimental.pallas import tpu as pltpu


# ---------------------------------------------------------------------------
# Fused kernel: a block of Bt batch samples per grid step.
#   fold (style-mod * conv_scale) into the flattened conv weight (f32) -> bf16 cast ->
#   batched MXU contraction against im2col patches (f32 acc) -> demod post-scale ->
#   noise injection -> fused bias/leaky-relu epilogue.
# Broadcasts are layout-natural (per-channel vectors on sublanes, per-pixel on lanes),
# so no in-kernel transposes/relayouts are needed.
# ---------------------------------------------------------------------------
def _styled_conv_kernel(smod_ref, wmat_ref, patch_ref, noise_ref, nw_ref,
                        abias_ref, o_ref, *, eps, neg_slope, act_gain, demodulate):
    # Fold the (spatially constant) style modulation into the flattened conv weight.
    wf = wmat_ref[...][None, :, :] * smod_ref[...]              # (Bt, Cout, KKCin) f32

    # Push the MXU contraction right away (bf16 inputs, f32 accumulation). The demod
    # reduce + rsqrt below only feeds a post-scale, so it overlaps with the matmul
    # (XLU/EUP are separate VLIW slots) instead of sitting on its input path.
    acc = jnp.einsum("bok,bkn->bon", wf.astype(jnp.bfloat16), patch_ref[...],
                     preferred_element_type=jnp.float32)        # (Bt, Cout, HW)

    if demodulate:
        # rsqrt computed from the f32 wf (pre-bf16-cast); scaling the accumulator is
        # mathematically identical to pre-scaling the weight (per-(b, Cout) row scale).
        demod = jax.lax.rsqrt(jnp.sum(wf * wf, axis=2, keepdims=True) + eps)
        acc = acc * demod

    # NoiseInjection: out + weight * noise (noise broadcasts over channels).
    acc = acc + noise_ref[...] * nw_ref[0]
    # FusedLeakyReLU: leaky_relu(out + bias, 0.2) * sqrt(2).
    acc = acc + abias_ref[...]
    acc = jnp.where(acc >= 0.0, acc, acc * neg_slope) * act_gain

    o_ref[...] = acc.astype(o_ref.dtype)


def _num_batch_blocks(batch):
    """Grid steps over the batch: 1 on single-TC chips (v5e/v6e), >=2 on v7x (2 TCs)."""
    num_tc = 1
    try:
        kind = jax.devices()[0].device_kind.lower()
        if ("v7" in kind) or ("7x" in kind):
            num_tc = 2
    except Exception:
        pass
    if num_tc > 1 and batch >= num_tc and batch % num_tc == 0:
        return num_tc
    return 1


def spade_test_styled_conv_ainp(x, style, conv_w, mod_w, mod_b,
                                noise_weight, act_bias, noise=None,
                                add_input=None, demodulate=True, eps=1e-8):
    """Forward of SpadeTestStyledConvAInp (upsample=False, downsample=False).

    x: (B, Cin, H, W) NCHW, style: (B, style_dim)
    conv_w: (Cout, Cin_total, K, K)   SpadeModulatedConv2d.weight
    mod_w:  (Cin_total, style_dim)    modulation EqualConv2d 1x1 weight
    mod_b:  (Cin_total,)              modulation bias (bias_init=1)
    noise_weight: (1,)                NoiseInjection.weight
    act_bias: (Cout,)                 FusedLeakyReLU.bias
    noise: (B, 1, H, W) or None; add_input: (1, C_add, H, W) or None.
    """
    if add_input is not None:
        ainp = jnp.broadcast_to(add_input, (x.shape[0],) + tuple(add_input.shape[1:]))
        x = jnp.concatenate([x, ainp], axis=1)

    B, Cin, H, W = x.shape
    Cout, Cin_w, K, _ = conv_w.shape
    assert Cin_w == Cin, "conv weight in_channel must match x (+ add_input) channels"
    style_dim = mod_w.shape[1]
    pad = K // 2
    HW, KK, KKCin = H * W, K * K, K * K * Cin
    conv_scale = 1.0 / math.sqrt(Cin * K * K)       # SpadeModulatedConv2d.scale
    mod_scale = 1.0 / math.sqrt(style_dim)          # EqualConv2d(style_dim, Cin, 1) scale

    if noise is None:
        # TODO(synk): PyTorch samples N(0,1) noise when noise is None; with the default
        # zero noise weight this is a no-op, so zeros keep the forward deterministic.
        noise = jnp.zeros((B, 1, H, W), jnp.float32)

    # ---- wrapper-side layout glue (cheap XLA ops; no kernel compute hoisted) ----
    # Style modulation hoisted out of the kernel: the EqualConv2d 1x1 applied to a
    # spatially-constant style map is a (B, style_dim) x (style_dim, Cin) linear.
    # Tile across the K*K taps so columns match the patch row order (tap-major, cin).
    s = (style.astype(jnp.float32) @ (mod_w.astype(jnp.float32) * mod_scale).T
         + mod_b.astype(jnp.float32))                               # (B, Cin)
    smod = jnp.tile(s, (1, KK)).reshape(B, 1, KKCin)                # (B, 1, KKCin)

    # im2col in bf16 (cast before pad/stack): (B, K*K*Cin, H*W) with row index
    # (ky*K + kx)*Cin + c and spatial on lanes.
    xp = jnp.pad(x.astype(jnp.bfloat16), ((0, 0), (0, 0), (pad, pad), (pad, pad)))
    cols = [xp[:, :, ky:ky + H, kx:kx + W] for ky in range(K) for kx in range(K)]
    patches = jnp.stack(cols, axis=1).reshape(B, KKCin, HW)

    # Conv weight flattened to (Cout, K*K*Cin) matching the patch row order; fold the
    # fan-in scale once (stays f32 so demod is computed from f32 values).
    wmat = (jnp.transpose(conv_w, (0, 2, 3, 1)).reshape(Cout, KKCin)
            * conv_scale).astype(jnp.float32)

    noise3 = noise.reshape(B, 1, HW).astype(jnp.float32)
    nw = jnp.asarray(noise_weight, jnp.float32).reshape(1)          # SMEM scalar
    ab = jnp.asarray(act_bias, jnp.float32).reshape(Cout, 1)

    # Grid over the batch: 1 step (whole batch) on v5e/v6e, B//2-sized blocks on v7x.
    steps = _num_batch_blocks(B)
    Bt = B // steps

    out_flat = pl.pallas_call(
        functools.partial(_styled_conv_kernel, eps=eps, neg_slope=0.2,
                          act_gain=math.sqrt(2.0), demodulate=demodulate),
        out_shape=jax.ShapeDtypeStruct((B, Cout, HW), jnp.float32),
        grid_spec=pltpu.PrefetchScalarGridSpec(
            num_scalar_prefetch=0,
            grid=(steps,),
            in_specs=[
                pl.BlockSpec((Bt, 1, KKCin), lambda i: (i, 0, 0)),    # style modulation
                pl.BlockSpec((Cout, KKCin), lambda i: (0, 0)),        # conv weight*scale
                pl.BlockSpec((Bt, KKCin, HW), lambda i: (i, 0, 0)),   # im2col patches bf16
                pl.BlockSpec((Bt, 1, HW), lambda i: (i, 0, 0)),       # noise
                pl.BlockSpec(memory_space=pltpu.MemorySpace.SMEM),    # noise weight scalar
                pl.BlockSpec((Cout, 1), lambda i: (0, 0)),            # activation bias
            ],
            out_specs=pl.BlockSpec((Bt, Cout, HW), lambda i: (i, 0, 0)),  # lane-dense out
        ),
        compiler_params=pltpu.CompilerParams(dimension_semantics=("parallel",)),
    )(smod, wmat, patches, noise3, nw, ab)

    return out_flat.reshape(B, Cout, H, W)


# ---------------------------------------------------------------------------
# Pure-JAX reference mirroring the PyTorch forward exactly.
# ---------------------------------------------------------------------------
def reference(x, style, conv_w, mod_w, mod_b, noise_weight, act_bias, noise,
              demodulate=True, eps=1e-8):
    B, Cin, H, W = x.shape
    Cout, _, K, _ = conv_w.shape
    style_dim = mod_w.shape[1]
    conv_scale = 1.0 / math.sqrt(Cin * K * K)
    mod_scale = 1.0 / math.sqrt(style_dim)
    # EqualConv2d(style_dim, Cin, 1) applied to the spatially-replicated style map
    # is a plain linear layer per pixel (spatially constant result).
    s = style @ (mod_w * mod_scale).T + mod_b                        # (B, Cin)
    xin = x * s[:, :, None, None] * conv_scale
    pad = K // 2
    out = jax.lax.conv_general_dilated(
        xin, conv_w, window_strides=(1, 1),
        padding=[(pad, pad), (pad, pad)],
        dimension_numbers=("NCHW", "OIHW", "NCHW"))
    if demodulate:
        w_s = conv_w * conv_scale
        demod = jax.lax.rsqrt(
            jnp.sum((w_s[None] * s[:, None, :, None, None]) ** 2, axis=(2, 3, 4)) + eps)
        out = out * demod[:, :, None, None]
    out = out + noise_weight.reshape(()) * noise                     # NoiseInjection
    out = jax.nn.leaky_relu(out + act_bias[None, :, None, None], 0.2) * math.sqrt(2.0)
    return out


if __name__ == "__main__":
    key = jax.random.PRNGKey(0)
    k1, k2, k3, k4, k5, k6 = jax.random.split(key, 6)

    # module hyper-params: in_channel=4, out_channel=8, kernel_size=3, style_dim=16
    B, Cin, Cout, K, style_dim, H, W = 2, 4, 8, 3, 16, 16, 16

    x = jax.random.normal(k1, (B, Cin, H, W), jnp.float32)
    style = jax.random.normal(k2, (B, style_dim), jnp.float32)
    noise = jax.random.normal(k3, (B, 1, H, W), jnp.float32)

    conv_w = jax.random.normal(k4, (Cout, Cin, K, K), jnp.float32)   # SpadeModulatedConv2d.weight
    mod_w = jax.random.normal(k5, (Cin, style_dim), jnp.float32)     # modulation 1x1 conv weight
    mod_b = jnp.ones((Cin,), jnp.float32)                            # bias_init=1
    noise_weight = jnp.full((1,), 0.2, jnp.float32)                  # 0 at init; nonzero to exercise path
    act_bias = 0.1 * jax.random.normal(k6, (Cout,), jnp.float32)     # FusedLeakyReLU bias (0 at init)

    out = spade_test_styled_conv_ainp(x, style, conv_w, mod_w, mod_b,
                                      noise_weight, act_bias, noise=noise)
    out = jax.block_until_ready(out)

    ref = reference(x, style, conv_w, mod_w, mod_b, noise_weight, act_bias, noise)
    assert out.shape == (B, Cout, H, W)
    # bf16 MXU inputs (f32 accumulation): tolerance reflects bf16 input rounding.
    max_err = float(jnp.max(jnp.abs(out - ref)))
    assert jnp.allclose(out, ref, atol=5e-2, rtol=5e-2), max_err

    print("KERNEL_OK")
</pallas_src>

<mosaic_0001>
module attributes {stable_mosaic.version = 11 : i64} {
  func.func @_styled_conv_kernel(%arg0: i32, %arg1: memref<2x1x36xf32, #tpu.memory_space<vmem>>, %arg2: memref<8x36xf32, #tpu.memory_space<vmem>>, %arg3: memref<2x36x256xbf16, #tpu.memory_space<vmem>>, %arg4: memref<2x1x256xf32, #tpu.memory_space<vmem>>, %arg5: memref<1xf32, #tpu.memory_space<smem>>, %arg6: memref<8x1xf32, #tpu.memory_space<vmem>>, %arg7: memref<2x8x256xf32, #tpu.memory_space<vmem>>) attributes {dimension_semantics = [#tpu.dimension_semantics<parallel>], iteration_bounds = array<i64: 1>, scalar_prefetch = 0 : i64, scratch_operands = 0 : i64, tpu.core_type = #tpu.core_type<tc>, window_params = [{transform_indices = @transform_0, window_bounds = array<i64: 2, 1, 36>}, {pipeline_mode = #tpu.pipeline_mode<synchronous>, transform_indices = @transform_1, window_bounds = array<i64: 8, 36>}, {transform_indices = @transform_2, window_bounds = array<i64: 2, 36, 256>}, {transform_indices = @transform_3, window_bounds = array<i64: 2, 1, 256>}, {transform_indices = @transform_4, window_bounds = array<i64: 1>}, {pipeline_mode = #tpu.pipeline_mode<synchronous>, transform_indices = @transform_5, window_bounds = array<i64: 8, 1>}, {transform_indices = @transform_6, window_bounds = array<i64: 2, 8, 256>}]} {
    %c0 = arith.constant 0 : index
    %c0_0 = arith.constant 0 : index
    %0 = vector.load %arg2[%c0, %c0_0] : memref<8x36xf32, #tpu.memory_space<vmem>>, vector<8x36xf32>
    %1 = vector.shape_cast %0 : vector<8x36xf32> to vector<1x8x36xf32>
    %c0_1 = arith.constant 0 : index
    %c0_2 = arith.constant 0 : index
    %c0_3 = arith.constant 0 : index
    %2 = vector.load %arg1[%c0_1, %c0_2, %c0_3] : memref<2x1x36xf32, #tpu.memory_space<vmem>>, vector<2x1x36xf32>
    %3 = vector.broadcast %1 : vector<1x8x36xf32> to vector<2x8x36xf32>
    %4 = vector.broadcast %2 : vector<2x1x36xf32> to vector<2x8x36xf32>
    %5 = arith.mulf %3, %4 : vector<2x8x36xf32>
    %6 = arith.truncf %5 : vector<2x8x36xf32> to vector<2x8x36xbf16>
    %c0_4 = arith.constant 0 : index
    %c0_5 = arith.constant 0 : index
    %c0_6 = arith.constant 0 : index
    %7 = vector.load %arg3[%c0_4, %c0_5, %c0_6] : memref<2x36x256xbf16, #tpu.memory_space<vmem>>, vector<2x36x256xbf16>
    "tpu.trace_start"() <{level = 10 : i32, message = "bok,bkn->bon"}> : () -> ()
    %cst = arith.constant dense<0.000000e+00> : vector<2x8x256xf32>
    %8 = tpu.matmul %6, %7, %cst {dimension_numbers = #tpu.dot_dimension_numbers<[2], [1], [1], [2], [0, 0, 0, 1, 1, 2], [0], [0]>} : vector<2x8x36xbf16>, vector<2x36x256xbf16>, vector<2x8x256xf32> -> vector<2x8x256xf32>
    "tpu.trace_stop"() : () -> ()
    %9 = arith.mulf %5, %5 : vector<2x8x36xf32>
    %cst_7 = arith.constant dense<0.000000e+00> : vector<2x8xf32>
    %10 = vector.multi_reduction <add>, %9, %cst_7 [2] : vector<2x8x36xf32> to vector<2x8xf32>
    %11 = vector.shape_cast %10 : vector<2x8xf32> to vector<2x8x1xf32>
    %cst_8 = arith.constant 9.99999993E-9 : f32
    %12 = vector.broadcast %cst_8 : f32 to vector<2x8x1xf32>
    %13 = arith.addf %11, %12 : vector<2x8x1xf32>
    %14 = math.rsqrt %13 : vector<2x8x1xf32>
    %15 = vector.broadcast %14 : vector<2x8x1xf32> to vector<2x8x256xf32>
    %16 = arith.mulf %8, %15 : vector<2x8x256xf32>
    %c0_9 = arith.constant 0 : index
    %c0_10 = arith.constant 0 : index
    %c0_11 = arith.constant 0 : index
    %17 = vector.load %arg4[%c0_9, %c0_10, %c0_11] : memref<2x1x256xf32, #tpu.memory_space<vmem>>, vector<2x1x256xf32>
    %c0_12 = arith.constant 0 : index
    %18 = memref.load %arg5[%c0_12] : memref<1xf32, #tpu.memory_space<smem>>
    %19 = vector.broadcast %18 : f32 to vector<2x1x256xf32>
    %20 = arith.mulf %17, %19 : vector<2x1x256xf32>
    %21 = vector.broadcast %20 : vector<2x1x256xf32> to vector<2x8x256xf32>
    %22 = arith.addf %16, %21 : vector<2x8x256xf32>
    %c0_13 = arith.constant 0 : index
    %c0_14 = arith.constant 0 : index
    %23 = vector.load %arg6[%c0_13, %c0_14] : memref<8x1xf32, #tpu.memory_space<vmem>>, vector<8x1xf32>
    %24 = vector.shape_cast %23 : vector<8x1xf32> to vector<1x8x1xf32>
    %25 = vector.broadcast %24 : vector<1x8x1xf32> to vector<2x8x256xf32>
    %26 = arith.addf %22, %25 : vector<2x8x256xf32>
    %cst_15 = arith.constant 0.000000e+00 : f32
    %27 = vector.broadcast %cst_15 : f32 to vector<2x8x256xf32>
    %28 = arith.cmpf oge, %26, %27 : vector<2x8x256xf32>
    %cst_16 = arith.constant 2.000000e-01 : f32
    %29 = vector.broadcast %cst_16 : f32 to vector<2x8x256xf32>
    %30 = arith.mulf %26, %29 : vector<2x8x256xf32>
    %31 = arith.select %28, %26, %30 : vector<2x8x256xi1>, vector<2x8x256xf32>
    %cst_17 = arith.constant 1.41421354 : f32
    %32 = vector.broadcast %cst_17 : f32 to vector<2x8x256xf32>
    %33 = arith.mulf %31, %32 : vector<2x8x256xf32>
    %c0_18 = arith.constant 0 : index
    %c0_19 = arith.constant 0 : index
    %c0_20 = arith.constant 0 : index
    %34 = vector.load %arg7[%c0_18, %c0_19, %c0_20] : memref<2x8x256xf32, #tpu.memory_space<vmem>>, vector<2x8x256xf32>
    tpu.vector_store %arg7[%c0_18, %c0_19, %c0_20], %33 {strides = array<i32>} : memref<2x8x256xf32, #tpu.memory_space<vmem>>, vector<2x8x256xf32>,
    return
  }
  func.func @transform_0(%arg0: i32) -> (i32, i32, i32) {
    %c0_i32 = arith.constant 0 : i32
    %c0_i32_0 = arith.constant 0 : i32
    %c0_i32_1 = arith.constant 0 : i32
    return %arg0, %c0_i32, %c0_i32_0 : i32, i32, i32
  }
  func.func @transform_1(%arg0: i32) -> (i32, i32) {
    %c0_i32 = arith.constant 0 : i32
    %c0_i32_0 = arith.constant 0 : i32
    %c0_i32_1 = arith.constant 0 : i32
    return %c0_i32, %c0_i32_0 : i32, i32
  }
  func.func @transform_2(%arg0: i32) -> (i32, i32, i32) {
    %c0_i32 = arith.constant 0 : i32
    %c0_i32_0 = arith.constant 0 : i32
    %c0_i32_1 = arith.constant 0 : i32
    return %arg0, %c0_i32, %c0_i32_0 : i32, i32, i32
  }
  func.func @transform_3(%arg0: i32) -> (i32, i32, i32) {
    %c0_i32 = arith.constant 0 : i32
    %c0_i32_0 = arith.constant 0 : i32
    %c0_i32_1 = arith.constant 0 : i32
    return %arg0, %c0_i32, %c0_i32_0 : i32, i32, i32
  }
  func.func @transform_4(%arg0: i32) -> i32 {
    %c0_i32 = arith.constant 0 : i32
    %c0_i32_0 = arith.constant 0 : i32
    return %c0_i32 : i32
  }
  func.func @transform_5(%arg0: i32) -> (i32, i32) {
    %c0_i32 = arith.constant 0 : i32
    %c0_i32_0 = arith.constant 0 : i32
    %c0_i32_1 = arith.constant 0 : i32
    return %c0_i32, %c0_i32_0 : i32, i32
  }
  func.func @transform_6(%arg0: i32) -> (i32, i32, i32) {
    %c0_i32 = arith.constant 0 : i32
    %c0_i32_0 = arith.constant 0 : i32
    %c0_i32_1 = arith.constant 0 : i32
    return %arg0, %c0_i32, %c0_i32_0 : i32, i32, i32
  }
}

</mosaic_0001>

<llo_original>
// kernel: tpu_custom_call.1
$region0: #{tpu_custom_call.1}
  #allocation0 [shape = 'u32[]', space=smem, size = 0x4, offset = 0x4, fixed_abs, tag = 'smem constant byte address 0x4 - core index']
  #allocation1 [shape = 'u32[144,128]{1,0:T(1,128)}', space=vmem, size = 0x12000, scoped, tag = 'internal scratch']
  #allocation2 [shape = 'f32[1]{0:T(128)S(6)}', space=smem, size = 0x200, scoped, tag = 'scoped memory for tpu_custom_call.1']
  %s0 = inlined_call_operand.vmem [shape: f32[2,1,36], index: 0, kind: input, shape index: {}]
  %s1 = inlined_call_operand.vmem [shape: f32[8,36], index: 1, kind: input, shape index: {}]
  %s2 = inlined_call_operand.vmem [shape: bf16[2,36,256], index: 2, kind: input, shape index: {}]
  %s3 = inlined_call_operand.vmem [shape: f32[2,1,256], index: 3, kind: input, shape index: {}]
  %s4 = inlined_call_operand.<no memory space> [shape: f32[1], index: 4, kind: input, shape index: {}]
  %s5 = inlined_call_operand.vmem [shape: f32[8,1], index: 5, kind: input, shape index: {}]
  %s6 = inlined_call_operand.hbm [shape: f32[2,8,256], index: 6, kind: output, shape index: {}]
  %s7 = sld [smem:[#allocation0]]
  $region34: #{tpu_custom_call.1} parent=0
    _
  %s9 = ssub.s32 1, %s7
  %s10 = scalar_select 0, %s9, %s7
  %11 = sst [smem:[#allocation2]] %s4
  $region1: #{tpu_custom_call.1} parent=0
    #allocation3 [shape = 'u8[16384]{0}', space=vmem, size = 0x4000, scoped, tag = 'output window, operand 0, single buffered']
    #allocation4 [shape = 's32[1]{0}', space=sflag, size = 0x4, scoped, tag = 'scoped memory for tpu_custom_call.1']
    %12 = vsyncpa [#allocation4], 0
    // Predicated region
    $region2: #{tpu_custom_call.1} parent=1 // pred_check
      _
    $region3: #{tpu_custom_call.1} parent=1 // pred_check_branch
      %14 = sbr.rel (0) target = $region5
    $region4: #{tpu_custom_call.1} parent=1 // pred_region
      _
    $region5: #{tpu_custom_call.1} parent=1 // pred_fallthru
      _
    // Predicated region
    $region6: #{tpu_custom_call.1} parent=1 // pred_check
      _
    $region7: #{tpu_custom_call.1} parent=1 // pred_check_branch
      %16 = sbr.rel (0) target = $region9
    $region8: #{tpu_custom_call.1} parent=1 // pred_region
      _
    $region9: #{tpu_custom_call.1} parent=1 // pred_fallthru
      _
    // Predicated region
    $region10: #{tpu_custom_call.1} parent=1 // pred_check
      _
    $region11: #{tpu_custom_call.1} parent=1 // pred_check_branch
      %18 = sbr.rel (0) target = $region13
    $region12: #{tpu_custom_call.1} parent=1 // pred_region
      _
    $region13: #{tpu_custom_call.1} parent=1 // pred_fallthru
      _
    // Predicated region
    $region14: #{tpu_custom_call.1} parent=1 // pred_check
      _
    $region15: #{tpu_custom_call.1} parent=1 // pred_check_branch
      %20 = sbr.rel (0) target = $region17
    $region16: #{tpu_custom_call.1} parent=1 // pred_region
      _
    $region17: #{tpu_custom_call.1} parent=1 // pred_fallthru
      _
    // Predicated region
    $region18: #{tpu_custom_call.1} parent=1 // pred_check
      _
    $region19: #{tpu_custom_call.1} parent=1 // pred_check_branch
      %22 = sbr.rel (0) target = $region21
    $region20: #{tpu_custom_call.1} parent=1 // pred_region
      _
    $region21: #{tpu_custom_call.1} parent=1 // pred_fallthru
      _
    // Predicated region
    $region22: #{tpu_custom_call.1} parent=1 // pred_check
      _
    $region23: #{tpu_custom_call.1} parent=1 // pred_check_branch
      %24 = sbr.rel (0) target = $region25
    $region24: #{tpu_custom_call.1} parent=1 // pred_region
      _
    $region25: #{tpu_custom_call.1} parent=1 // pred_fallthru
      _
    %v26 = vld [vmem:[%s1] sm:$0xff]
    %v27 = vld [vmem:[%s0] sm:$0x1]
    %v28 = vld [vmem:[%s0 + $0x1] sm:$0x1]
    %v31 = vlaneseq
    %v32 = vshrl.u32 %v31, 7
    %v33 = vsub.s32 0, %v32
    %v34 = vrot.slane %v27, %v33
    %v35 = vlaneseq
    %v36 = vshrl.u32 %v35, 7
    %v37 = vsub.s32 0, %v36
    %v38 = vrot.slane %v28, %v37
    %v41 = vmul.f32 %v26, %v34
    %v42 = vmul.f32 %v26, %v38
    %v43 = vpack.c.bf16 %v41, %v41
    %v44 = vpack.c.bf16 %v42, %v42
    %v45 = vld [vmem:[%s2] sm:$0xff]
    %v46 = vld [vmem:[%s2 + $0x8] sm:$0xff]
    %v47 = vld [vmem:[%s2 + $0x10] sm:$0xff]
    %v48 = vld [vmem:[%s2 + $0x18] sm:$0xff]
    %v49 = vld [vmem:[%s2 + $0x20] sm:$0x33]
    %v50 = vld [vmem:[%s2 + $0x28] sm:$0xff]
    %v51 = vld [vmem:[%s2 + $0x30] sm:$0xff]
    %v52 = vld [vmem:[%s2 + $0x38] sm:$0xff]
    %v53 = vld [vmem:[%s2 + $0x40] sm:$0xff]
    %v54 = vld [vmem:[%s2 + $0x48] sm:$0x33]
    %v60 = vunpack.c.l.b16 %v45
    %v61 = vunpack.c.h.b16 %v45
    %v62 = vunpack.c.l.b16 %v46
    %v63 = vunpack.c.h.b16 %v46
    %v64 = vunpack.c.l.b16 %v47
    %v65 = vunpack.c.h.b16 %v47
    %v66 = vunpack.c.l.b16 %v48
    %v67 = vunpack.c.h.b16 %v48
    %v68 = vunpack.c.l.b16 %v49
    %v69 = vunpack.c.h.b16 %v49
    %v70 = vpack.c.b16 %v62, %v60
    %v71 = vpack.c.b16 %v63, %v61
    %v72 = vpack.c.b16 %v66, %v64
    %v73 = vpack.c.b16 %v67, %v65
    %v74 = vpack.c.b16 %v68, %v68
    %v75 = vpack.c.b16 %v69, %v69
    %vm80 = vcmask 293888
    %v82 = vsel %vm80, %v43, 0
    %vm84 = vcmask 1041408
    %v86 = vsel %vm84, %v74, 0
    %v89 = vsel %vm84, %v75, 0
    %91 = vmatprep.subr.bf16.mxu0 %v71
    %92 = vmatpush1.bf16.msra.mxu0 %v70
    %93 = vmatprep.subr.bf16.mxu0 %v73
    %94 = vmatpush1.bf16.msra.mxu0 %v72
    %95 = vmatprep.subr.bf16.mxu0 %v89
    %96 = vmatpush1.bf16.msra.mxu0 %v86
    %97 = vmatprep.subr.bf16.mxu0 0
    %98 = vmatpush1.bf16.msra.mxu0 0
    %99 = vmatprep.subr.bf16.mxu0 0
    %100 = vmatpush1.bf16.msra.mxu0 0
    %101 = vmatprep.subr.bf16.mxu0 0
    %102 = vmatpush1.bf16.msra.mxu0 0
    %103 = vmatprep.subr.bf16.mxu0 0
    %104 = vmatpush1.bf16.msra.mxu0 0
    %105 = vmatprep.subr.bf16.mxu0 0
    %106 = vmatpush1.bf16.msra.mxu0 0
    %107 = vmatprep.subr.bf16.mxu0 0
    %108 = vmatpush1.bf16.msra.mxu0 0
    %109 = vmatprep.subr.bf16.mxu0 0
    %110 = vmatpush1.bf16.msra.mxu0 0
    %111 = vmatprep.subr.bf16.mxu0 0
    %112 = vmatpush1.bf16.msra.mxu0 0
    %113 = vmatprep.subr.bf16.mxu0 0
    %114 = vmatpush1.bf16.msra.mxu0 0
    %115 = vmatprep.subr.bf16.mxu0 0
    %116 = vmatpush1.bf16.msra.mxu0 0
    %117 = vmatprep.subr.bf16.mxu0 0
    %118 = vmatpush1.bf16.msra.mxu0 0
    %119 = vmatprep.subr.bf16.mxu0 0
    %120 = vmatpush1.bf16.msra.mxu0 0
    %121 = vmatprep.subr.bf16.mxu0 0
    %122 = vmatpush1.bf16.msra.mxu0 0
    %123 = vmatprep.mubr.bf16.mxu0 0
    %124 = vmatmul.mubr.bf16.gmra.mrb[0].mxu0 %v82
    %v125 = vpop.f32.mrb[0].mxu0
    %v126 = vadd.f32 0.0, %v125
    %v127 = vpop.f32.mrb[0].mxu0
    %v128 = vadd.f32 0.0, %v127
    %v129 = vpop.f32.mrb[0].mxu0
    %v130 = vpop.f32.mrb[0].mxu0
    %131 = vdwg.mxu0
    %v137 = vunpack.c.l.b16 %v50
    %v138 = vunpack.c.h.b16 %v50
    %v139 = vunpack.c.l.b16 %v51
    %v140 = vunpack.c.h.b16 %v51
    %v141 = vunpack.c.l.b16 %v52
    %v142 = vunpack.c.h.b16 %v52
    %v143 = vunpack.c.l.b16 %v53
    %v144 = vunpack.c.h.b16 %v53
    %v145 = vunpack.c.l.b16 %v54
    %v146 = vunpack.c.h.b16 %v54
    %v147 = vpack.c.b16 %v139, %v137
    %v148 = vpack.c.b16 %v140, %v138
    %v149 = vpack.c.b16 %v143, %v141
    %v150 = vpack.c.b16 %v144, %v142
    %v151 = vpack.c.b16 %v145, %v145
    %v152 = vpack.c.b16 %v146, %v146
    %v158 = vsel %vm80, %v44, 0
    %v161 = vsel %vm84, %v151, 0
    %v164 = vsel %vm84, %v152, 0
    %166 = vmatprep.subr.bf16.mxu0 %v148
    %167 = vmatpush1.bf16.msra.mxu0 %v147
    %168 = vmatprep.subr.bf16.mxu0 %v150
    %169 = vmatpush1.bf16.msra.mxu0 %v149
    %170 = vmatprep.subr.bf16.mxu0 %v164
    %171 = vmatpush1.bf16.msra.mxu0 %v161
    %172 = vmatprep.subr.bf16.mxu0 0
    %173 = vmatpush1.bf16.msra.mxu0 0
    %174 = vmatprep.subr.bf16.mxu0 0
    %175 = vmatpush1.bf16.msra.mxu0 0
    %176 = vmatprep.subr.bf16.mxu0 0
    %177 = vmatpush1.bf16.msra.mxu0 0
    %178 = vmatprep.subr.bf16.mxu0 0
    %179 = vmatpush1.bf16.msra.mxu0 0
    %180 = vmatprep.subr.bf16.mxu0 0
    %181 = vmatpush1.bf16.msra.mxu0 0
    %182 = vmatprep.subr.bf16.mxu0 0
    %183 = vmatpush1.bf16.msra.mxu0 0
    %184 = vmatprep.subr.bf16.mxu0 0
    %185 = vmatpush1.bf16.msra.mxu0 0
    %186 = vmatprep.subr.bf16.mxu0 0
    %187 = vmatpush1.bf16.msra.mxu0 0
    %188 = vmatprep.subr.bf16.mxu0 0
    %189 = vmatpush1.bf16.msra.mxu0 0
    %190 = vmatprep.subr.bf16.mxu0 0
    %191 = vmatpush1.bf16.msra.mxu0 0
    %192 = vmatprep.subr.bf16.mxu0 0
    %193 = vmatpush1.bf16.msra.mxu0 0
    %194 = vmatprep.subr.bf16.mxu0 0
    %195 = vmatpush1.bf16.msra.mxu0 0
    %196 = vmatprep.subr.bf16.mxu0 0
    %197 = vmatpush1.bf16.msra.mxu0 0
    %198 = vmatprep.mubr.bf16.mxu0 0
    %199 = vmatmul.mubr.bf16.gmra.mrb[0].mxu0 %v158
    %v200 = vpop.f32.mrb[0].mxu0
    %v201 = vadd.f32 0.0, %v200
    %v202 = vpop.f32.mrb[0].mxu0
    %v203 = vadd.f32 0.0, %v202
    %v204 = vpop.f32.mrb[0].mxu0
    %v205 = vpop.f32.mrb[0].mxu0
    %206 = vdwg.mxu0
    %v207 = vmul.f32 %v41, %v41
    %v208 = vmul.f32 %v42, %v42
    %v209 = vsel %vm80, %v207, 0.0
    %210 = vadd.xlane.f32.xlu0 %v209
    %v211 = vpop.xlane.xlu0 %210
    %v212 = vsel %vm80, %v208, 0.0
    %213 = vadd.xlane.f32.xlu0 %v212
    %v214 = vpop.xlane.xlu0 %213
    %v215 = vadd.f32 %v211, 1e-08
    %v216 = vadd.f32 %v214, 1e-08
    %v217 = vrsqrt.pop %v215
    %v218 = vrsqrt.pop %v216
    %v219 = vmul.f32 %v126, %v217
    %v220 = vmul.f32 %v128, %v217
    %v221 = vmul.f32 %v201, %v218
    %v222 = vmul.f32 %v203, %v218
    %v223 = vld [vmem:[%s3] sm:$0x3]
    %v224 = vld [vmem:[%s3 + $0x2] sm:$0x3]
    %s225 = sld [smem:[#allocation2]]
    %v226 = vstv %s225
    %v227 = vmul.f32 %v223, %v226
    %v228 = vmul.f32 %v224, %v226
    %v231 = vlaneseq
    %v232 = vshrl.u32 %v231, 7
    %v233 = vsub.s32 0, %v232
    %v234 = vrot.slane %v227, %v233
    %v235 = vlaneseq
    %v236 = vshrl.u32 %v235, 7
    %v237 = vsub.s32 1, %v236
    %v238 = vrot.slane %v227, %v237
    %v239 = vlaneseq
    %v240 = vshrl.u32 %v239, 7
    %v241 = vsub.s32 0, %v240
    %v242 = vrot.slane %v228, %v241
    %v243 = vlaneseq
    %v244 = vshrl.u32 %v243, 7
    %v245 = vsub.s32 1, %v244
    %v246 = vrot.slane %v228, %v245
    %v251 = vadd.f32 %v219, %v234
    %v252 = vadd.f32 %v220, %v238
    %v253 = vadd.f32 %v221, %v242
    %v254 = vadd.f32 %v222, %v246
    %v255 = vld [vmem:[%s5] sm:$0xff]
    %257 = vset.pattern.permute.xlu0 0
    %258 = vperm.xlu0 %257, %v255
    %v259 = vpop.permute.xlu0 %258
    %v261 = vadd.f32 %v251, %v259
    %v262 = vadd.f32 %v252, %v259
    %v263 = vadd.f32 %v253, %v259
    %v264 = vadd.f32 %v254, %v259
    %vm265 = vcmp.ge.f32.partialorder %v261, 0.0
    %vm266 = vcmp.ge.f32.partialorder %v262, 0.0
    %vm267 = vcmp.ge.f32.partialorder %v263, 0.0
    %vm268 = vcmp.ge.f32.partialorder %v264, 0.0
    %v269 = vmul.f32 %v261, 0.2
    %v270 = vmul.f32 %v262, 0.2
    %v271 = vmul.f32 %v263, 0.2
    %v272 = vmul.f32 %v264, 0.2
    %v273 = vsel %vm265, %v261, %v269
    %v274 = vsel %vm266, %v262, %v270
    %v275 = vsel %vm267, %v263, %v271
    %v276 = vsel %vm268, %v264, %v272
    %v277 = vmul.f32 %v273, 1.4142135
    %v278 = vmul.f32 %v274, 1.4142135
    %v279 = vmul.f32 %v275, 1.4142135
    %v280 = vmul.f32 %v276, 1.4142135
    %281 = vst [vmem:[#allocation3] sm:$0xff] %v277
    %282 = vst [vmem:[#allocation3 + $0x8] sm:$0xff] %v278
    %283 = vst [vmem:[#allocation3 + $0x10] sm:$0xff] %v279
    %284 = vst [vmem:[#allocation3 + $0x18] sm:$0xff] %v280
    // Predicated region
    $region26: #{tpu_custom_call.1} parent=1 // pred_check
      _
    $region27: #{tpu_custom_call.1} parent=1 // pred_check_branch
      %286 = sbr.rel (0) target = $region29
    $region28: #{tpu_custom_call.1} parent=1 // pred_region
      %s288 = ssub.s32 512, 512
      %289 = vsyncadd [#allocation4], %s288
      %s290 = sshll.u32 [#allocation3], 4
      %s291 = int_to_ptr.vmem [resolvable:$true] %s290
      %296 = dma.vmem_to_hbm [thread:$0]  %s291, 512, %s6, [#allocation4], 256, 256, 16
    $region29: #{tpu_custom_call.1} parent=1 // pred_fallthru
      _
    // Predicated region
    $region30: #{tpu_custom_call.1} parent=1 // pred_check
      _
    $region31: #{tpu_custom_call.1} parent=1 // pred_check_branch
      %298 = sbr.rel (0) target = $region33
    $region32: #{tpu_custom_call.1} parent=1 // pred_region
      %299 = dma.done [#allocation4], 512
    $region33: #{tpu_custom_call.1} parent=1 // pred_fallthru
      _
    %300 = vsyncpa [#allocation4], 1

</llo_original>
